<compile_context>
chip_gen: v7x
topology: tpu7x:2x2x1
jax: 0.10.0
libtpu: 0.0.40
codegen_flags: <defaults>
</compile_context>

<pallas_src>
import functools

import jax
import jax.numpy as jnp
from jax.experimental import pallas as pl
from jax.experimental.pallas import tpu as pltpu


def _round_up(x, m):
    return (x + m - 1) // m * m


_MIB = 1024 * 1024
_VMEM_BUDGET = 40 * _MIB        # keep comfortably under v7x's 64 MiB physical VMEM
_VMEM_LIMIT_CAP = 48 * _MIB


def _vmem_bytes(tb, in_p, to_p, itemsize):
    """Conservative VMEM footprint estimate for one pipelined step."""
    x_bytes = 2 * 2 * tb * in_p * itemsize                  # x1,x2 double-buffered tiles
    w_bytes = 2 * (in_p * to_p + to_p * to_p) * itemsize    # resident weights (count 2 bufs)
    c_bytes = 2 * 8 * to_p * 4                              # merged consts (pad to 8 sublanes)
    o_bytes = 2 * tb * 128 * 4                              # (tb,1) output pads to 128 lanes
    return x_bytes + w_bytes + c_bytes + o_bytes


def _nplda_kernel(x1_ref, x2_ref, lda_wT_ref, wccn_wT_ref, consts_ref, s_ref,
                  *, defer_normalize):
    # F.normalize(eps=1e-12): y / max(||y||, eps) == y * rsqrt(max(||y||^2, eps^2)).
    # Differs from the torch form only when ||y|| is in ~(1e-19, 1e-12), where the
    # squared norm underflows toward f32 denormals — negligible for real x-vectors.
    eps_sq = jnp.float32(1e-24)

    c = consts_ref[...]                                   # (4, to_p) f32, grid-resident
    lda_b, wccn_b, P, Q = c[0:1, :], c[1:2, :], c[2:3, :], c[3:4, :]

    lda_wT = lda_wT_ref[...]                              # (in_p, to_p), resident
    wccn_wT = wccn_wT_ref[...]                            # (to_p, to_p), resident

    # Two dot chains against the same resident RHS (no in-kernel concat copy);
    # back-to-back dots with the same RHS reuse the pushed MXU weights.
    y1 = jnp.dot(x1_ref[...], lda_wT, preferred_element_type=jnp.float32) + lda_b
    y2 = jnp.dot(x2_ref[...], lda_wT, preferred_element_type=jnp.float32) + lda_b

    # Row-norm scale; rsqrt goes to the otherwise-idle EUP slot.
    inv1 = jax.lax.rsqrt(jnp.maximum(jnp.sum(y1 * y1, axis=1, keepdims=True), eps_sq))
    inv2 = jax.lax.rsqrt(jnp.maximum(jnp.sum(y2 * y2, axis=1, keepdims=True), eps_sq))

    if defer_normalize:
        # f32 path: apply the per-row scale AFTER the wccn matmul
        # ((y * inv) @ W == (y @ W) * inv), so the second MXU matmul is not
        # data-dependent on the XLU reduce + EUP rsqrt.
        a = jnp.dot(y1, wccn_wT, preferred_element_type=jnp.float32) * inv1 + wccn_b
        b = jnp.dot(y2, wccn_wT, preferred_element_type=jnp.float32) * inv2 + wccn_b
    else:
        # bf16 path: normalize BEFORE the matmul so unit-norm rows keep the
        # bf16 matmul error bounded.
        a = jnp.dot((y1 * inv1).astype(wccn_wT.dtype), wccn_wT,
                    preferred_element_type=jnp.float32) + wccn_b
        b = jnp.dot((y2 * inv2).astype(wccn_wT.dtype), wccn_wT,
                    preferred_element_type=jnp.float32) + wccn_b

    # Fused PLDA score: S = sum_j Q_j*(a_j^2 + b_j^2) + 2*P_j*a_j*b_j.
    # Padded lanes of the weights / consts are zero, so they contribute nothing.
    t = Q * (a * a + b * b) + 2.0 * (P * (a * b))
    s_ref[...] = jnp.sum(t, axis=1, keepdims=True)        # (tb, 1)


@functools.partial(jax.jit, static_argnames=("block_batch", "matmul_dtype"))
def nplda_forward(x1, x2, lda_w, lda_b, wccn_w, wccn_b, p_sqrt, q,
                  *, block_batch=1024, matmul_dtype=jnp.bfloat16):
    """NPLDA.forward(x1, x2) -> scores (batch,).

    matmul_dtype=bf16 (default) halves HBM streaming of the x-vector batches and
    uses the native MXU rate on v5e; accumulation, normalization and the PLDA
    score stay in f32.  Pass matmul_dtype=jnp.float32 for tight-tolerance output.
    """
    batch, in_dim = x1.shape
    to_dim = lda_w.shape[0]
    mdtype = jnp.dtype(matmul_dtype)
    itemsize = mdtype.itemsize
    is_f32 = mdtype == jnp.dtype(jnp.float32)

    # Pad feature dims to full 128-lane vregs (padded lanes are zero everywhere).
    in_p = _round_up(in_dim, 128)
    to_p = _round_up(to_dim, 128)

    # ---- batch tile selection --------------------------------------------------
    tb = _round_up(min(max(block_batch, 128), max(batch, 1)), 128)
    # v7x megacore: guarantee >= 2 grid tiles (one per TensorCore) when the batch
    # is big enough to be worth splitting.
    if batch >= 256 and _round_up(batch, tb) // tb < 2:
        tb = _round_up((batch + 1) // 2, 128)
    # v7x VMEM budget (64 MiB physical): shrink the tile until the estimate fits.
    while tb > 128 and _vmem_bytes(tb, in_p, to_p, itemsize) > _VMEM_BUDGET:
        tb = _round_up(tb // 2, 128)
    padded_batch = _round_up(batch, tb)
    num_tiles = padded_batch // tb
    vmem_limit = int(min(_VMEM_LIMIT_CAP,
                         max(16 * _MIB, 2 * _vmem_bytes(tb, in_p, to_p, itemsize))))

    # ---- one-time parameter prep (tiny, runs once under jit) --------------------
    f32 = jnp.float32
    lda_wT = jnp.pad(lda_w.T.astype(f32),
                     ((0, in_p - in_dim), (0, to_p - to_dim))).astype(mdtype)
    wccn_wT = jnp.pad(wccn_w.T.astype(f32),
                      ((0, to_p - to_dim), (0, to_p - to_dim))).astype(mdtype)

    def _padvec(v):
        return jnp.pad(v.astype(f32), (0, to_p - to_dim))

    # Merged constant buffer: [lda_bias, wccn_bias, P = P_sqrt**2, Q]  (f32, resident).
    consts = jnp.stack([_padvec(lda_b), _padvec(wccn_b),
                        _padvec(p_sqrt * p_sqrt), _padvec(q)], axis=0)      # (4, to_p)

    # ---- input prep: skip pad when already aligned; cast-then-pad fuses in XLA --
    def _prep_x(x):
        if x.dtype != mdtype:
            x = x.astype(mdtype)             # cast first (halves the pad's write bytes)
        if padded_batch != batch or in_p != in_dim:
            x = jnp.pad(x, ((0, padded_batch - batch), (0, in_p - in_dim)))
        return x                              # no-op when already aligned & right dtype

    x1p = _prep_x(x1)
    x2p = _prep_x(x2)

    # NOTE: x_spec is the candidate for pipeline_mode=pl.Buffered(3) on v7x if
    # profiling shows exposed DMA latency at large tiles (VMEM budget permitting).
    x_spec = pl.BlockSpec((tb, in_p), lambda i: (i, 0))
    resident = lambda shape: pl.BlockSpec(shape, lambda i: (0, 0))

    # NOTE: the (tb, 1) score column keeps the proven layout.  A lane-dense output
    # would need an in-kernel sublane->lane relayout of the per-row sums; output
    # traffic is <0.5% of the streamed input bytes, so the masked-store cost stays
    # hidden under the x1/x2 DMA.
    out = pl.pallas_call(
        functools.partial(_nplda_kernel, defer_normalize=is_f32),
        out_shape=jax.ShapeDtypeStruct((padded_batch, 1), jnp.float32),
        grid=(num_tiles,),
        in_specs=[
            x_spec,                          # x1 tile  (streamed, double-buffered)
            x_spec,                          # x2 tile
            resident((in_p, to_p)),          # lda weight  (transposed, zero-padded)
            resident((to_p, to_p)),          # wccn weight (transposed, zero-padded)
            resident((4, to_p)),             # [lda_b, wccn_b, P, Q]
        ],
        out_specs=pl.BlockSpec((tb, 1), lambda i: (i, 0)),
        compiler_params=pltpu.CompilerParams(
            dimension_semantics=("parallel",),
            vmem_limit_bytes=vmem_limit),
    )(x1p, x2p, lda_wT, wccn_wT, consts)

    return out[:batch, 0]


def _reference(x1, x2, lda_w, lda_b, wccn_w, wccn_b, p_sqrt, q):
    """Plain-JAX reference mirroring the PyTorch forward."""
    def embed(x):
        y = x @ lda_w.T + lda_b
        n = jnp.sqrt(jnp.sum(y * y, axis=1, keepdims=True))
        y = y / jnp.maximum(n, 1e-12)
        return y @ wccn_w.T + wccn_b
    a = embed(x1)
    b = embed(x2)
    P = p_sqrt * p_sqrt
    return ((a * q * a).sum(1) + (b * q * b).sum(1) + 2.0 * (a * P * b).sum(1))


if __name__ == "__main__":
    key = jax.random.PRNGKey(0)
    ks = jax.random.split(key, 6)

    in_dim = 128     # x-vector dim fed to LDA
    to_dim = 64      # LDA / PLDA dim (padded to 128 lanes inside the wrapper)

    # Synthetic "Kaldi" quantities (deterministic), mirroring NPLDA.__init__
    # with contains_bias=True.
    mean = jax.random.normal(ks[0], (in_dim,), jnp.float32)
    kaldi_lda = jax.random.normal(ks[1], (to_dim, in_dim + 1), jnp.float32) * 0.1
    diag_transform = jax.random.normal(ks[2], (to_dim, to_dim), jnp.float32) * 0.1
    plda_mean = jax.random.normal(ks[3], (to_dim,), jnp.float32)
    diagP = jax.random.uniform(ks[4], (to_dim,), jnp.float32)      # >= 0
    diagQ = jax.random.normal(ks[5], (to_dim,), jnp.float32)

    # Parameter construction (same arithmetic as the PyTorch __init__).
    lda_w = kaldi_lda[:, :-1]                                      # (to_dim, in_dim)
    lda_b = kaldi_lda[:, -1] - lda_w @ mean                        # (to_dim,)
    wccn_w = diag_transform                                        # (to_dim, to_dim)
    wccn_b = -(diag_transform @ plda_mean)                         # (to_dim,)
    p_sqrt = jnp.sqrt(diagP)                                       # (to_dim,)
    q_vec = diagQ                                                  # (to_dim,)

    def run_case(batch, seed, **kw):
        k1, k2 = jax.random.split(jax.random.PRNGKey(seed))
        x1 = jax.random.normal(k1, (batch, in_dim), jnp.float32)
        x2 = jax.random.normal(k2, (batch, in_dim), jnp.float32)
        s = jax.block_until_ready(
            nplda_forward(x1, x2, lda_w, lda_b, wccn_w, wccn_b, p_sqrt, q_vec, **kw))
        s_ref = _reference(x1, x2, lda_w, lda_b, wccn_w, wccn_b, p_sqrt, q_vec)
        return s, s_ref

    # f32 path, single tile (batch not a multiple of the tile -> exercises padding
    # and the deferred-normalization path).
    s, s_ref = run_case(100, 1, matmul_dtype=jnp.float32)
    assert s.shape == (100,)
    assert jnp.allclose(s, s_ref, rtol=1e-4, atol=1e-3), (
        "f32 max abs err", float(jnp.max(jnp.abs(s - s_ref))))

    # f32 path, batch large enough that the >=2-tile (v7x megacore) heuristic splits
    # the batch across grid tiles (exercises multi-tile pipelining + batch padding).
    s, s_ref = run_case(300, 2, matmul_dtype=jnp.float32)
    assert s.shape == (300,)
    assert jnp.allclose(s, s_ref, rtol=1e-4, atol=1e-3), (
        "f32 multi-tile max abs err", float(jnp.max(jnp.abs(s - s_ref))))

    # Default bf16 matmul path (halves HBM streaming; looser tolerance by design —
    # raw x-vectors are cast to bf16 before the LDA matmul).
    s, s_ref = run_case(100, 3)
    assert s.shape == (100,)
    assert jnp.allclose(s, s_ref, rtol=5e-2, atol=5e-1), (
        "bf16 max abs err", float(jnp.max(jnp.abs(s - s_ref))))

    print("KERNEL_OK")
</pallas_src>

<mosaic_0001>
module attributes {stable_mosaic.version = 11 : i64} {
  func.func @_nplda_kernel(%arg0: i32, %arg1: memref<128x128xf32, #tpu.memory_space<vmem>>, %arg2: memref<128x128xf32, #tpu.memory_space<vmem>>, %arg3: memref<128x128xf32, #tpu.memory_space<vmem>>, %arg4: memref<128x128xf32, #tpu.memory_space<vmem>>, %arg5: memref<4x128xf32, #tpu.memory_space<vmem>>, %arg6: memref<128x1xf32, #tpu.memory_space<vmem>>) attributes {dimension_semantics = [#tpu.dimension_semantics<parallel>], iteration_bounds = array<i64: 1>, scalar_prefetch = 0 : i64, scratch_operands = 0 : i64, tpu.core_type = #tpu.core_type<tc>, window_params = [{transform_indices = @transform_0, window_bounds = array<i64: 128, 128>}, {transform_indices = @transform_1, window_bounds = array<i64: 128, 128>}, {pipeline_mode = #tpu.pipeline_mode<synchronous>, transform_indices = @transform_2, window_bounds = array<i64: 128, 128>}, {pipeline_mode = #tpu.pipeline_mode<synchronous>, transform_indices = @transform_3, window_bounds = array<i64: 128, 128>}, {pipeline_mode = #tpu.pipeline_mode<synchronous>, transform_indices = @transform_4, window_bounds = array<i64: 4, 128>}, {transform_indices = @transform_5, window_bounds = array<i64: 128, 1>}]} {
    %c0 = arith.constant 0 : index
    %c0_0 = arith.constant 0 : index
    %0 = vector.load %arg5[%c0, %c0_0] : memref<4x128xf32, #tpu.memory_space<vmem>>, vector<4x128xf32>
    %1 = vector.extract_strided_slice %0 {offsets = [0, 0], sizes = [1, 128], strides = [1, 1]} : vector<4x128xf32> to vector<1x128xf32>
    %2 = vector.extract_strided_slice %0 {offsets = [1, 0], sizes = [1, 128], strides = [1, 1]} : vector<4x128xf32> to vector<1x128xf32>
    %3 = vector.extract_strided_slice %0 {offsets = [2, 0], sizes = [1, 128], strides = [1, 1]} : vector<4x128xf32> to vector<1x128xf32>
    %4 = vector.extract_strided_slice %0 {offsets = [3, 0], sizes = [1, 128], strides = [1, 1]} : vector<4x128xf32> to vector<1x128xf32>
    %c0_1 = arith.constant 0 : index
    %c0_2 = arith.constant 0 : index
    %5 = vector.load %arg3[%c0_1, %c0_2] : memref<128x128xf32, #tpu.memory_space<vmem>>, vector<128x128xf32>
    %c0_3 = arith.constant 0 : index
    %c0_4 = arith.constant 0 : index
    %6 = vector.load %arg4[%c0_3, %c0_4] : memref<128x128xf32, #tpu.memory_space<vmem>>, vector<128x128xf32>
    %c0_5 = arith.constant 0 : index
    %c0_6 = arith.constant 0 : index
    %7 = vector.load %arg1[%c0_5, %c0_6] : memref<128x128xf32, #tpu.memory_space<vmem>>, vector<128x128xf32>
    %cst = arith.constant dense<0.000000e+00> : vector<128x128xf32>
    %8 = tpu.matmul %7, %5, %cst {dimension_numbers = #tpu.dot_dimension_numbers<[1], [0], [0], [1], [0, 0, 1, 1], [], []>} : vector<128x128xf32>, vector<128x128xf32>, vector<128x128xf32> -> vector<128x128xf32>
    %9 = vector.broadcast %1 : vector<1x128xf32> to vector<128x128xf32>
    %10 = arith.addf %8, %9 : vector<128x128xf32>
    %c0_7 = arith.constant 0 : index
    %c0_8 = arith.constant 0 : index
    %11 = vector.load %arg2[%c0_7, %c0_8] : memref<128x128xf32, #tpu.memory_space<vmem>>, vector<128x128xf32>
    %cst_9 = arith.constant dense<0.000000e+00> : vector<128x128xf32>
    %12 = tpu.matmul %11, %5, %cst_9 {dimension_numbers = #tpu.dot_dimension_numbers<[1], [0], [0], [1], [0, 0, 1, 1], [], []>} : vector<128x128xf32>, vector<128x128xf32>, vector<128x128xf32> -> vector<128x128xf32>
    %13 = vector.broadcast %1 : vector<1x128xf32> to vector<128x128xf32>
    %14 = arith.addf %12, %13 : vector<128x128xf32>
    %15 = arith.mulf %10, %10 : vector<128x128xf32>
    %cst_10 = arith.constant dense<0.000000e+00> : vector<128xf32>
    %16 = vector.multi_reduction <add>, %15, %cst_10 [1] : vector<128x128xf32> to vector<128xf32>
    %17 = vector.shape_cast %16 : vector<128xf32> to vector<128x1xf32>
    %cst_11 = arith.constant 1.000000e-24 : f32
    %18 = vector.broadcast %cst_11 : f32 to vector<128x1xf32>
    %19 = arith.maximumf %17, %18 : vector<128x1xf32>
    %20 = math.rsqrt %19 : vector<128x1xf32>
    %21 = arith.mulf %14, %14 : vector<128x128xf32>
    %cst_12 = arith.constant dense<0.000000e+00> : vector<128xf32>
    %22 = vector.multi_reduction <add>, %21, %cst_12 [1] : vector<128x128xf32> to vector<128xf32>
    %23 = vector.shape_cast %22 : vector<128xf32> to vector<128x1xf32>
    %cst_13 = arith.constant 1.000000e-24 : f32
    %24 = vector.broadcast %cst_13 : f32 to vector<128x1xf32>
    %25 = arith.maximumf %23, %24 : vector<128x1xf32>
    %26 = math.rsqrt %25 : vector<128x1xf32>
    %cst_14 = arith.constant dense<0.000000e+00> : vector<128x128xf32>
    %27 = tpu.matmul %10, %6, %cst_14 {dimension_numbers = #tpu.dot_dimension_numbers<[1], [0], [0], [1], [0, 0, 1, 1], [], []>} : vector<128x128xf32>, vector<128x128xf32>, vector<128x128xf32> -> vector<128x128xf32>
    %28 = vector.broadcast %20 : vector<128x1xf32> to vector<128x128xf32>
    %29 = arith.mulf %27, %28 : vector<128x128xf32>
    %30 = vector.broadcast %2 : vector<1x128xf32> to vector<128x128xf32>
    %31 = arith.addf %29, %30 : vector<128x128xf32>
    %cst_15 = arith.constant dense<0.000000e+00> : vector<128x128xf32>
    %32 = tpu.matmul %14, %6, %cst_15 {dimension_numbers = #tpu.dot_dimension_numbers<[1], [0], [0], [1], [0, 0, 1, 1], [], []>} : vector<128x128xf32>, vector<128x128xf32>, vector<128x128xf32> -> vector<128x128xf32>
    %33 = vector.broadcast %26 : vector<128x1xf32> to vector<128x128xf32>
    %34 = arith.mulf %32, %33 : vector<128x128xf32>
    %35 = vector.broadcast %2 : vector<1x128xf32> to vector<128x128xf32>
    %36 = arith.addf %34, %35 : vector<128x128xf32>
    %37 = arith.mulf %31, %31 : vector<128x128xf32>
    %38 = arith.mulf %36, %36 : vector<128x128xf32>
    %39 = arith.addf %37, %38 : vector<128x128xf32>
    %40 = vector.broadcast %4 : vector<1x128xf32> to vector<128x128xf32>
    %41 = arith.mulf %40, %39 : vector<128x128xf32>
    %42 = arith.mulf %31, %36 : vector<128x128xf32>
    %43 = vector.broadcast %3 : vector<1x128xf32> to vector<128x128xf32>
    %44 = arith.mulf %43, %42 : vector<128x128xf32>
    %cst_16 = arith.constant 2.000000e+00 : f32
    %45 = vector.broadcast %cst_16 : f32 to vector<128x128xf32>
    %46 = arith.mulf %45, %44 : vector<128x128xf32>
    %47 = arith.addf %41, %46 : vector<128x128xf32>
    %cst_17 = arith.constant dense<0.000000e+00> : vector<128xf32>
    %48 = vector.multi_reduction <add>, %47, %cst_17 [1] : vector<128x128xf32> to vector<128xf32>
    %49 = vector.shape_cast %48 : vector<128xf32> to vector<128x1xf32>
    %c0_18 = arith.constant 0 : index
    %c0_19 = arith.constant 0 : index
    %50 = vector.load %arg6[%c0_18, %c0_19] : memref<128x1xf32, #tpu.memory_space<vmem>>, vector<128x1xf32>
    tpu.vector_store %arg6[%c0_18, %c0_19], %49 {strides = array<i32>} : memref<128x1xf32, #tpu.memory_space<vmem>>, vector<128x1xf32>,
    return
  }
  func.func @transform_0(%arg0: i32) -> (i32, i32) {
    %c0_i32 = arith.constant 0 : i32
    %c0_i32_0 = arith.constant 0 : i32
    return %arg0, %c0_i32 : i32, i32
  }
  func.func @transform_1(%arg0: i32) -> (i32, i32) {
    %c0_i32 = arith.constant 0 : i32
    %c0_i32_0 = arith.constant 0 : i32
    return %arg0, %c0_i32 : i32, i32
  }
  func.func @transform_2(%arg0: i32) -> (i32, i32) {
    %c0_i32 = arith.constant 0 : i32
    %c0_i32_0 = arith.constant 0 : i32
    %c0_i32_1 = arith.constant 0 : i32
    return %c0_i32, %c0_i32_0 : i32, i32
  }
  func.func @transform_3(%arg0: i32) -> (i32, i32) {
    %c0_i32 = arith.constant 0 : i32
    %c0_i32_0 = arith.constant 0 : i32
    %c0_i32_1 = arith.constant 0 : i32
    return %c0_i32, %c0_i32_0 : i32, i32
  }
  func.func @transform_4(%arg0: i32) -> (i32, i32) {
    %c0_i32 = arith.constant 0 : i32
    %c0_i32_0 = arith.constant 0 : i32
    %c0_i32_1 = arith.constant 0 : i32
    return %c0_i32, %c0_i32_0 : i32, i32
  }
  func.func @transform_5(%arg0: i32) -> (i32, i32) {
    %c0_i32 = arith.constant 0 : i32
    %c0_i32_0 = arith.constant 0 : i32
    return %arg0, %c0_i32 : i32, i32
  }
}

</mosaic_0001>

<llo_original>
// kernel: mul.1
$region0: #{mul.1}
  #allocation0 [shape = 's32[1]{0}', space=sflag, size = 0x4, scoped, tag = 'scoped memory for mul.1']
  %s0 = inlined_call_operand.vmem [shape: f32[64], index: 0, kind: input, shape index: {}, may-alias: {0,1}]
  %s1 = inlined_call_operand.vmem [shape: f32[64], index: 1, kind: input, shape index: {}, may-alias: {0,1}]
  %s2 = inlined_call_operand.vmem [shape: f32[64], index: 2, kind: output, shape index: {}]
  %v3 = vld [vmem:[%s0] sm:$0x1]
  %v4 = vld [vmem:[%s1] sm:$0x1]
  %5 = xla_tuple %v3, %v4
  %6 = xla_tuple %5
  %v7 = vmul.f32 %v3, %v4
  %8 = xla_tuple %v7
  %9 = vst [vmem:[%s2] sm:$0x1] %v7

// kernel: nplda_forward.1
$region0: #{nplda_forward.1}
  #allocation0 [shape = 'u32[]', space=smem, size = 0x4, offset = 0x4, fixed_abs, tag = 'smem constant byte address 0x4 - core index']
  #allocation1 [shape = 'u32[144,128]{1,0:T(1,128)}', space=vmem, size = 0x12000, scoped, tag = 'internal scratch']
  %s0 = inlined_call_operand.vmem [shape: f32[128,128], index: 0, kind: input, shape index: {}]
  %s1 = inlined_call_operand.vmem [shape: f32[128,128], index: 1, kind: input, shape index: {}]
  %s2 = inlined_call_operand.vmem [shape: f32[128,128], index: 2, kind: input, shape index: {}]
  %s3 = inlined_call_operand.vmem [shape: f32[128,128], index: 3, kind: input, shape index: {}]
  %s4 = inlined_call_operand.vmem [shape: f32[4,128], index: 4, kind: input, shape index: {}]
  %s5 = inlined_call_operand.vmem [shape: f32[128,1], index: 5, kind: output, shape index: {}]
  %s6 = sld [smem:[#allocation0]]
  $region30: #{nplda_forward.1} parent=0
    _
  %s8 = ssub.s32 1, %s6
  %s9 = scalar_select 0, %s8, %s6
  // Predicated region
  $region2: #{nplda_forward.1} parent=0 // pred_check
    _
  $region3: #{nplda_forward.1} parent=0 // pred_check_branch
    %11 = sbr.rel (0) target = $region5
  $region4: #{nplda_forward.1} parent=0 // pred_region
    _
  $region5: #{nplda_forward.1} parent=0 // pred_fallthru
    _
  // Predicated region
  $region6: #{nplda_forward.1} parent=0 // pred_check
    _
  $region7: #{nplda_forward.1} parent=0 // pred_check_branch
    %13 = sbr.rel (0) target = $region9
  $region8: #{nplda_forward.1} parent=0 // pred_region
    _
  $region9: #{nplda_forward.1} parent=0 // pred_fallthru
    _
  // Predicated region
  $region10: #{nplda_forward.1} parent=0 // pred_check
    _
  $region11: #{nplda_forward.1} parent=0 // pred_check_branch
    %15 = sbr.rel (0) target = $region13
  $region12: #{nplda_forward.1} parent=0 // pred_region
    _
  $region13: #{nplda_forward.1} parent=0 // pred_fallthru
    _
  // Predicated region
  $region14: #{nplda_forward.1} parent=0 // pred_check
    _
  $region15: #{nplda_forward.1} parent=0 // pred_check_branch
    %17 = sbr.rel (0) target = $region17
  $region16: #{nplda_forward.1} parent=0 // pred_region
    _
  $region17: #{nplda_forward.1} parent=0 // pred_fallthru
    _
  // Predicated region
  $region18: #{nplda_forward.1} parent=0 // pred_check
    _
  $region19: #{nplda_forward.1} parent=0 // pred_check_branch
    %19 = sbr.rel (0) target = $region21
  $region20: #{nplda_forward.1} parent=0 // pred_region
    _
  $region21: #{nplda_forward.1} parent=0 // pred_fallthru
    _
  %v20 = vld [vmem:[%s4] sm:$0xf]
  %v21 = vld [vmem:[%s2] sm:$0xff]
  %v22 = vld [vmem:[%s2 + $0x8] sm:$0xff]
  %v23 = vld [vmem:[%s2 + $0x10] sm:$0xff]
  %v24 = vld [vmem:[%s2 + $0x18] sm:$0xff]
  %v25 = vld [vmem:[%s2 + $0x20] sm:$0xff]
  %v26 = vld [vmem:[%s2 + $0x28] sm:$0xff]
  %v27 = vld [vmem:[%s2 + $0x30] sm:$0xff]
  %v28 = vld [vmem:[%s2 + $0x38] sm:$0xff]
  %v29 = vld [vmem:[%s2 + $0x40] sm:$0xff]
  %v30 = vld [vmem:[%s2 + $0x48] sm:$0xff]
  %v31 = vld [vmem:[%s2 + $0x50] sm:$0xff]
  %v32 = vld [vmem:[%s2 + $0x58] sm:$0xff]
  %v33 = vld [vmem:[%s2 + $0x60] sm:$0xff]
  %v34 = vld [vmem:[%s2 + $0x68] sm:$0xff]
  %v35 = vld [vmem:[%s2 + $0x70] sm:$0xff]
  %v36 = vld [vmem:[%s2 + $0x78] sm:$0xff]
  %v37 = vld [vmem:[%s3] sm:$0xff]
  %v38 = vld [vmem:[%s3 + $0x8] sm:$0xff]
  %v39 = vld [vmem:[%s3 + $0x10] sm:$0xff]
  %v40 = vld [vmem:[%s3 + $0x18] sm:$0xff]
  %v41 = vld [vmem:[%s3 + $0x20] sm:$0xff]
  %v42 = vld [vmem:[%s3 + $0x28] sm:$0xff]
  %v43 = vld [vmem:[%s3 + $0x30] sm:$0xff]
  %v44 = vld [vmem:[%s3 + $0x38] sm:$0xff]
  %v45 = vld [vmem:[%s3 + $0x40] sm:$0xff]
  %v46 = vld [vmem:[%s3 + $0x48] sm:$0xff]
  %v47 = vld [vmem:[%s3 + $0x50] sm:$0xff]
  %v48 = vld [vmem:[%s3 + $0x58] sm:$0xff]
  %v49 = vld [vmem:[%s3 + $0x60] sm:$0xff]
  %v50 = vld [vmem:[%s3 + $0x68] sm:$0xff]
  %v51 = vld [vmem:[%s3 + $0x70] sm:$0xff]
  %v52 = vld [vmem:[%s3 + $0x78] sm:$0xff]
  %v53 = vld [vmem:[%s0] sm:$0xff]
  %v54 = vld [vmem:[%s0 + $0x8] sm:$0xff]
  %v55 = vld [vmem:[%s0 + $0x10] sm:$0xff]
  %v56 = vld [vmem:[%s0 + $0x18] sm:$0xff]
  %v57 = vld [vmem:[%s0 + $0x20] sm:$0xff]
  %v58 = vld [vmem:[%s0 + $0x28] sm:$0xff]
  %v59 = vld [vmem:[%s0 + $0x30] sm:$0xff]
  %v60 = vld [vmem:[%s0 + $0x38] sm:$0xff]
  %v61 = vld [vmem:[%s0 + $0x40] sm:$0xff]
  %v62 = vld [vmem:[%s0 + $0x48] sm:$0xff]
  %v63 = vld [vmem:[%s0 + $0x50] sm:$0xff]
  %v64 = vld [vmem:[%s0 + $0x58] sm:$0xff]
  %v65 = vld [vmem:[%s0 + $0x60] sm:$0xff]
  %v66 = vld [vmem:[%s0 + $0x68] sm:$0xff]
  %v67 = vld [vmem:[%s0 + $0x70] sm:$0xff]
  %v68 = vld [vmem:[%s0 + $0x78] sm:$0xff]
  %v69 = vlaneseq
  %v70 = vshrl.u32 %v69, 7
  %v71 = vsub.s32 0, %v70
  %v72 = vrot.slane %v20, %v71
  %73 = vmatprep.subr.mxu0 0.0
  %74 = vmatpush1.msra.mxu0 %v21
  %75 = vmatprep.subr.mxu0 0.0
  %76 = vmatpush1.msra.mxu0 %v22
  %77 = vmatprep.subr.mxu0 0.0
  %78 = vmatpush1.msra.mxu0 %v23
  %79 = vmatprep.subr.mxu0 0.0
  %80 = vmatpush1.msra.mxu0 %v24
  %81 = vmatprep.subr.mxu0 0.0
  %82 = vmatpush1.msra.mxu0 %v25
  %83 = vmatprep.subr.mxu0 0.0
  %84 = vmatpush1.msra.mxu0 %v26
  %85 = vmatprep.subr.mxu0 0.0
  %86 = vmatpush1.msra.mxu0 %v27
  %87 = vmatprep.subr.mxu0 0.0
  %88 = vmatpush1.msra.mxu0 %v28
  %89 = vmatprep.subr.mxu0 0.0
  %90 = vmatpush1.msra.mxu0 %v29
  %91 = vmatprep.subr.mxu0 0.0
  %92 = vmatpush1.msra.mxu0 %v30
  %93 = vmatprep.subr.mxu0 0.0
  %94 = vmatpush1.msra.mxu0 %v31
  %95 = vmatprep.subr.mxu0 0.0
  %96 = vmatpush1.msra.mxu0 %v32
  %97 = vmatprep.subr.mxu0 0.0
  %98 = vmatpush1.msra.mxu0 %v33
  %99 = vmatprep.subr.mxu0 0.0
  %100 = vmatpush1.msra.mxu0 %v34
  %101 = vmatprep.subr.mxu0 0.0
  %102 = vmatpush1.msra.mxu0 %v35
  %103 = vmatprep.subr.mxu0 0.0
  %104 = vmatpush1.msra.mxu0 %v36
  %105 = vmatprep.subr.mxu0 0.0
  %106 = vmatpush1.msra.mxu0 0.0
  %107 = vmatprep.subr.mxu0 0.0
  %108 = vmatpush1.msra.mxu0 0.0
  %109 = vmatprep.subr.mxu0 0.0
  %110 = vmatpush1.msra.mxu0 0.0
  %111 = vmatprep.subr.mxu0 0.0
  %112 = vmatpush1.msra.mxu0 0.0
  %113 = vmatprep.subr.mxu0 0.0
  %114 = vmatpush1.msra.mxu0 0.0
  %115 = vmatprep.subr.mxu0 0.0
  %116 = vmatpush1.msra.mxu0 0.0
  %117 = vmatprep.subr.mxu0 0.0
  %118 = vmatpush1.msra.mxu0 0.0
  %119 = vmatprep.subr.mxu0 0.0
  %120 = vmatpush1.msra.mxu0 0.0
  %121 = vmatprep.subr.mxu0 0.0
  %122 = vmatpush1.msra.mxu0 0.0
  %123 = vmatprep.subr.mxu0 0.0
  %124 = vmatpush1.msra.mxu0 0.0
  %125 = vmatprep.subr.mxu0 0.0
  %126 = vmatpush1.msra.mxu0 0.0
  %127 = vmatprep.subr.mxu0 0.0
  %128 = vmatpush1.msra.mxu0 0.0
  %129 = vmatprep.subr.mxu0 0.0
  %130 = vmatpush1.msra.mxu0 0.0
  %131 = vmatprep.subr.mxu0 0.0
  %132 = vmatpush1.msra.mxu0 0.0
  %133 = vmatprep.subr.mxu0 0.0
  %134 = vmatpush1.msra.mxu0 0.0
  %135 = vmatprep.subr.mxu0 0.0
  %136 = vmatpush1.msra.mxu0 0.0
  %137 = vmatprep.mubr.f32.mxu0 0.0
  %138 = vmatmul.mubr.f32.gmra.mrb[0].mxu0 %v53
  %v139 = vpop.f32.mrb[0].mxu0
  %v140 = vadd.f32 %v72, %v139
  %v141 = vpop.f32.mrb[0].mxu0
  %142 = vmatprep.mubr.f32.mxu0 0.0
  %143 = vmatmul.mubr.f32.gmra.mrb[0].mxu0 %v54
  %v144 = vpop.f32.mrb[0].mxu0
  %v145 = vadd.f32 %v72, %v144
  %v146 = vpop.f32.mrb[0].mxu0
  %147 = vmatprep.mubr.f32.mxu0 0.0
  %148 = vmatmul.mubr.f32.gmra.mrb[0].mxu0 %v55
  %v149 = vpop.f32.mrb[0].mxu0
  %v150 = vadd.f32 %v72, %v149
  %v151 = vpop.f32.mrb[0].mxu0
  %152 = vmatprep.mubr.f32.mxu0 0.0
  %153 = vmatmul.mubr.f32.gmra.mrb[0].mxu0 %v56
  %v154 = vpop.f32.mrb[0].mxu0
  %v155 = vadd.f32 %v72, %v154
  %v156 = vpop.f32.mrb[0].mxu0
  %157 = vmatprep.mubr.f32.mxu0 0.0
  %158 = vmatmul.mubr.f32.gmra.mrb[0].mxu0 %v57
  %v159 = vpop.f32.mrb[0].mxu0
  %v160 = vadd.f32 %v72, %v159
  %v161 = vpop.f32.mrb[0].mxu0
  %162 = vmatprep.mubr.f32.mxu0 0.0
  %163 = vmatmul.mubr.f32.gmra.mrb[0].mxu0 %v58
  %v164 = vpop.f32.mrb[0].mxu0
  %v165 = vadd.f32 %v72, %v164
  %v166 = vpop.f32.mrb[0].mxu0
  %167 = vmatprep.mubr.f32.mxu0 0.0
  %168 = vmatmul.mubr.f32.gmra.mrb[0].mxu0 %v59
  %v169 = vpop.f32.mrb[0].mxu0
  %v170 = vadd.f32 %v72, %v169
  %v171 = vpop.f32.mrb[0].mxu0
  %172 = vmatprep.mubr.f32.mxu0 0.0
  %173 = vmatmul.mubr.f32.gmra.mrb[0].mxu0 %v60
  %v174 = vpop.f32.mrb[0].mxu0
  %v175 = vadd.f32 %v72, %v174
  %v176 = vpop.f32.mrb[0].mxu0
  %177 = vmatprep.mubr.f32.mxu0 0.0
  %178 = vmatmul.mubr.f32.gmra.mrb[0].mxu0 %v61
  %v179 = vpop.f32.mrb[0].mxu0
  %v180 = vadd.f32 %v72, %v179
  %v181 = vpop.f32.mrb[0].mxu0
  %182 = vmatprep.mubr.f32.mxu0 0.0
  %183 = vmatmul.mubr.f32.gmra.mrb[0].mxu0 %v62
  %v184 = vpop.f32.mrb[0].mxu0
  %v185 = vadd.f32 %v72, %v184
  %v186 = vpop.f32.mrb[0].mxu0
  %187 = vmatprep.mubr.f32.mxu0 0.0
  %188 = vmatmul.mubr.f32.gmra.mrb[0].mxu0 %v63
  %v189 = vpop.f32.mrb[0].mxu0
  %v190 = vadd.f32 %v72, %v189
  %v191 = vpop.f32.mrb[0].mxu0
  %192 = vmatprep.mubr.f32.mxu0 0.0
  %193 = vmatmul.mubr.f32.gmra.mrb[0].mxu0 %v64
  %v194 = vpop.f32.mrb[0].mxu0
  %v195 = vadd.f32 %v72, %v194
  %v196 = vpop.f32.mrb[0].mxu0
  %197 = vmatprep.mubr.f32.mxu0 0.0
  %198 = vmatmul.mubr.f32.gmra.mrb[0].mxu0 %v65
  %v199 = vpop.f32.mrb[0].mxu0
  %v200 = vadd.f32 %v72, %v199
  %v201 = vpop.f32.mrb[0].mxu0
  %202 = vmatprep.mubr.f32.mxu0 0.0
  %203 = vmatmul.mubr.f32.gmra.mrb[0].mxu0 %v66
  %v204 = vpop.f32.mrb[0].mxu0
  %v205 = vadd.f32 %v72, %v204
  %v206 = vpop.f32.mrb[0].mxu0
  %207 = vmatprep.mubr.f32.mxu0 0.0
  %208 = vmatmul.mubr.f32.gmra.mrb[0].mxu0 %v67
  %v209 = vpop.f32.mrb[0].mxu0
  %v210 = vadd.f32 %v72, %v209
  %v211 = vpop.f32.mrb[0].mxu0
  %212 = vmatprep.mubr.f32.mxu0 0.0
  %213 = vmatmul.mubr.f32.gmra.mrb[0].mxu0 %v68
  %v214 = vpop.f32.mrb[0].mxu0
  %v215 = vadd.f32 %v72, %v214
  %v216 = vpop.f32.mrb[0].mxu0
  %217 = vdwg.mxu0
  %v218 = vld [vmem:[%s1] sm:$0xff]
  %v219 = vld [vmem:[%s1 + $0x8] sm:$0xff]
  %v220 = vld [vmem:[%s1 + $0x10] sm:$0xff]
  %v221 = vld [vmem:[%s1 + $0x18] sm:$0xff]
  %v222 = vld [vmem:[%s1 + $0x20] sm:$0xff]
  %v223 = vld [vmem:[%s1 + $0x28] sm:$0xff]
  %v224 = vld [vmem:[%s1 + $0x30] sm:$0xff]
  %v225 = vld [vmem:[%s1 + $0x38] sm:$0xff]
  %v226 = vld [vmem:[%s1 + $0x40] sm:$0xff]
  %v227 = vld [vmem:[%s1 + $0x48] sm:$0xff]
  %v228 = vld [vmem:[%s1 + $0x50] sm:$0xff]
  %v229 = vld [vmem:[%s1 + $0x58] sm:$0xff]
  %v230 = vld [vmem:[%s1 + $0x60] sm:$0xff]
  %v231 = vld [vmem:[%s1 + $0x68] sm:$0xff]
  %v232 = vld [vmem:[%s1 + $0x70] sm:$0xff]
  %v233 = vld [vmem:[%s1 + $0x78] sm:$0xff]
  %234 = vmatprep.subr.mxu0 0.0
  %235 = vmatpush1.msra.mxu0 %v21
  %236 = vmatprep.subr.mxu0 0.0
  %237 = vmatpush1.msra.mxu0 %v22
  %238 = vmatprep.subr.mxu0 0.0
  %239 = vmatpush1.msra.mxu0 %v23
  %240 = vmatprep.subr.mxu0 0.0
  %241 = vmatpush1.msra.mxu0 %v24
  %242 = vmatprep.subr.mxu0 0.0
  %243 = vmatpush1.msra.mxu0 %v25
  %244 = vmatprep.subr.mxu0 0.0
  %245 = vmatpush1.msra.mxu0 %v26
  %246 = vmatprep.subr.mxu0 0.0
  %247 = vmatpush1.msra.mxu0 %v27
  %248 = vmatprep.subr.mxu0 0.0
  %249 = vmatpush1.msra.mxu0 %v28
  %250 = vmatprep.subr.mxu0 0.0
  %251 = vmatpush1.msra.mxu0 %v29
  %252 = vmatprep.subr.mxu0 0.0
  %253 = vmatpush1.msra.mxu0 %v30
  %254 = vmatprep.subr.mxu0 0.0
  %255 = vmatpush1.msra.mxu0 %v31
  %256 = vmatprep.subr.mxu0 0.0
  %257 = vmatpush1.msra.mxu0 %v32
  %258 = vmatprep.subr.mxu0 0.0
  %259 = vmatpush1.msra.mxu0 %v33
  %260 = vmatprep.subr.mxu0 0.0
  %261 = vmatpush1.msra.mxu0 %v34
  %262 = vmatprep.subr.mxu0 0.0
  %263 = vmatpush1.msra.mxu0 %v35
  %264 = vmatprep.subr.mxu0 0.0
  %265 = vmatpush1.msra.mxu0 %v36
  %266 = vmatprep.subr.mxu0 0.0
  %267 = vmatpush1.msra.mxu0 0.0
  %268 = vmatprep.subr.mxu0 0.0
  %269 = vmatpush1.msra.mxu0 0.0
  %270 = vmatprep.subr.mxu0 0.0
  %271 = vmatpush1.msra.mxu0 0.0
  %272 = vmatprep.subr.mxu0 0.0
  %273 = vmatpush1.msra.mxu0 0.0
  %274 = vmatprep.subr.mxu0 0.0
  %275 = vmatpush1.msra.mxu0 0.0
  %276 = vmatprep.subr.mxu0 0.0
  %277 = vmatpush1.msra.mxu0 0.0
  %278 = vmatprep.subr.mxu0 0.0
  %279 = vmatpush1.msra.mxu0 0.0
  %280 = vmatprep.subr.mxu0 0.0
  %281 = vmatpush1.msra.mxu0 0.0
  %282 = vmatprep.subr.mxu0 0.0
  %283 = vmatpush1.msra.mxu0 0.0
  %284 = vmatprep.subr.mxu0 0.0
  %285 = vmatpush1.msra.mxu0 0.0
  %286 = vmatprep.subr.mxu0 0.0
  %287 = vmatpush1.msra.mxu0 0.0
  %288 = vmatprep.subr.mxu0 0.0
  %289 = vmatpush1.msra.mxu0 0.0
  %290 = vmatprep.subr.mxu0 0.0
  %291 = vmatpush1.msra.mxu0 0.0
  %292 = vmatprep.subr.mxu0 0.0
  %293 = vmatpush1.msra.mxu0 0.0
  %294 = vmatprep.subr.mxu0 0.0
  %295 = vmatpush1.msra.mxu0 0.0
  %296 = vmatprep.subr.mxu0 0.0
  %297 = vmatpush1.msra.mxu0 0.0
  %298 = vmatprep.mubr.f32.mxu0 0.0
  %299 = vmatmul.mubr.f32.gmra.mrb[0].mxu0 %v218
  %v300 = vpop.f32.mrb[0].mxu0
  %v301 = vadd.f32 %v72, %v300
  %v302 = vpop.f32.mrb[0].mxu0
  %303 = vmatprep.mubr.f32.mxu0 0.0
  %304 = vmatmul.mubr.f32.gmra.mrb[0].mxu0 %v219
  %v305 = vpop.f32.mrb[0].mxu0
  %v306 = vadd.f32 %v72, %v305
  %v307 = vpop.f32.mrb[0].mxu0
  %308 = vmatprep.mubr.f32.mxu0 0.0
  %309 = vmatmul.mubr.f32.gmra.mrb[0].mxu0 %v220
  %v310 = vpop.f32.mrb[0].mxu0
  %v311 = vadd.f32 %v72, %v310
  %v312 = vpop.f32.mrb[0].mxu0
  %313 = vmatprep.mubr.f32.mxu0 0.0
  %314 = vmatmul.mubr.f32.gmra.mrb[0].mxu0 %v221
  %v315 = vpop.f32.mrb[0].mxu0
  %v316 = vadd.f32 %v72, %v315
  %v317 = vpop.f32.mrb[0].mxu0
  %318 = vmatprep.mubr.f32.mxu0 0.0
  %319 = vmatmul.mubr.f32.gmra.mrb[0].mxu0 %v222
  %v320 = vpop.f32.mrb[0].mxu0
  %v321 = vadd.f32 %v72, %v320
  %v322 = vpop.f32.mrb[0].mxu0
  %323 = vmatprep.mubr.f32.mxu0 0.0
  %324 = vmatmul.mubr.f32.gmra.mrb[0].mxu0 %v223
  %v325 = vpop.f32.mrb[0].mxu0
  %v326 = vadd.f32 %v72, %v325
  %v327 = vpop.f32.mrb[0].mxu0
  %328 = vmatprep.mubr.f32.mxu0 0.0
  %329 = vmatmul.mubr.f32.gmra.mrb[0].mxu0 %v224
  %v330 = vpop.f32.mrb[0].mxu0
  %v331 = vadd.f32 %v72, %v330
  %v332 = vpop.f32.mrb[0].mxu0
  %333 = vmatprep.mubr.f32.mxu0 0.0
  %334 = vmatmul.mubr.f32.gmra.mrb[0].mxu0 %v225
  %v335 = vpop.f32.mrb[0].mxu0
  %v336 = vadd.f32 %v72, %v335
  %v337 = vpop.f32.mrb[0].mxu0
  %338 = vmatprep.mubr.f32.mxu0 0.0
  %339 = vmatmul.mubr.f32.gmra.mrb[0].mxu0 %v226
  %v340 = vpop.f32.mrb[0].mxu0
  %v341 = vadd.f32 %v72, %v340
  %v342 = vpop.f32.mrb[0].mxu0
  %343 = vmatprep.mubr.f32.mxu0 0.0
  %344 = vmatmul.mubr.f32.gmra.mrb[0].mxu0 %v227
  %v345 = vpop.f32.mrb[0].mxu0
  %v346 = vadd.f32 %v72, %v345
  %v347 = vpop.f32.mrb[0].mxu0
  %348 = vmatprep.mubr.f32.mxu0 0.0
  %349 = vmatmul.mubr.f32.gmra.mrb[0].mxu0 %v228
  %v350 = vpop.f32.mrb[0].mxu0
  %v351 = vadd.f32 %v72, %v350
  %v352 = vpop.f32.mrb[0].mxu0
  %353 = vmatprep.mubr.f32.mxu0 0.0
  %354 = vmatmul.mubr.f32.gmra.mrb[0].mxu0 %v229
  %v355 = vpop.f32.mrb[0].mxu0
  %v356 = vadd.f32 %v72, %v355
  %v357 = vpop.f32.mrb[0].mxu0
  %358 = vmatprep.mubr.f32.mxu0 0.0
  %359 = vmatmul.mubr.f32.gmra.mrb[0].mxu0 %v230
  %v360 = vpop.f32.mrb[0].mxu0
  %v361 = vadd.f32 %v72, %v360
  %v362 = vpop.f32.mrb[0].mxu0
  %363 = vmatprep.mubr.f32.mxu0 0.0
  %364 = vmatmul.mubr.f32.gmra.mrb[0].mxu0 %v231
  %v365 = vpop.f32.mrb[0].mxu0
  %v366 = vadd.f32 %v72, %v365
  %v367 = vpop.f32.mrb[0].mxu0
  %368 = vmatprep.mubr.f32.mxu0 0.0
  %369 = vmatmul.mubr.f32.gmra.mrb[0].mxu0 %v232
  %v370 = vpop.f32.mrb[0].mxu0
  %v371 = vadd.f32 %v72, %v370
  %v372 = vpop.f32.mrb[0].mxu0
  %373 = vmatprep.mubr.f32.mxu0 0.0
  %374 = vmatmul.mubr.f32.gmra.mrb[0].mxu0 %v233
  %v375 = vpop.f32.mrb[0].mxu0
  %v376 = vadd.f32 %v72, %v375
  %v377 = vpop.f32.mrb[0].mxu0
  %378 = vdwg.mxu0
  %v379 = vmul.f32 %v140, %v140
  %v380 = vmul.f32 %v145, %v145
  %v381 = vmul.f32 %v150, %v150
  %v382 = vmul.f32 %v155, %v155
  %v383 = vmul.f32 %v160, %v160
  %v384 = vmul.f32 %v165, %v165
  %v385 = vmul.f32 %v170, %v170
  %v386 = vmul.f32 %v175, %v175
  %v387 = vmul.f32 %v180, %v180
  %v388 = vmul.f32 %v185, %v185
  %v389 = vmul.f32 %v190, %v190
  %v390 = vmul.f32 %v195, %v195
  %v391 = vmul.f32 %v200, %v200
  %v392 = vmul.f32 %v205, %v205
  %v393 = vmul.f32 %v210, %v210
  %v394 = vmul.f32 %v215, %v215
  %395 = vadd.xlane.f32.xlu0 %v379
  %v396 = vpop.xlane.xlu0 %395
  %397 = vadd.xlane.f32.xlu0 %v380
  %v398 = vpop.xlane.xlu0 %397
  %399 = vadd.xlane.f32.xlu0 %v381
  %v400 = vpop.xlane.xlu0 %399
  %401 = vadd.xlane.f32.xlu0 %v382
  %v402 = vpop.xlane.xlu0 %401
  %403 = vadd.xlane.f32.xlu0 %v383
  %v404 = vpop.xlane.xlu0 %403
  %405 = vadd.xlane.f32.xlu0 %v384
  %v406 = vpop.xlane.xlu0 %405
  %407 = vadd.xlane.f32.xlu0 %v385
  %v408 = vpop.xlane.xlu0 %407
  %409 = vadd.xlane.f32.xlu0 %v386
  %v410 = vpop.xlane.xlu0 %409
  %411 = vadd.xlane.f32.xlu0 %v387
  %v412 = vpop.xlane.xlu0 %411
  %413 = vadd.xlane.f32.xlu0 %v388
  %v414 = vpop.xlane.xlu0 %413
  %415 = vadd.xlane.f32.xlu0 %v389
  %v416 = vpop.xlane.xlu0 %415
  %417 = vadd.xlane.f32.xlu0 %v390
  %v418 = vpop.xlane.xlu0 %417
  %419 = vadd.xlane.f32.xlu0 %v391
  %v420 = vpop.xlane.xlu0 %419
  %421 = vadd.xlane.f32.xlu0 %v392
  %v422 = vpop.xlane.xlu0 %421
  %423 = vadd.xlane.f32.xlu0 %v393
  %v424 = vpop.xlane.xlu0 %423
  %425 = vadd.xlane.f32.xlu0 %v394
  %v426 = vpop.xlane.xlu0 %425
  %v427 = vmax.f32 %v396, 1e-24
  %v428 = vmax.f32 %v398, 1e-24
  %v429 = vmax.f32 %v400, 1e-24
  %v430 = vmax.f32 %v402, 1e-24
  %v431 = vmax.f32 %v404, 1e-24
  %v432 = vmax.f32 %v406, 1e-24
  %v433 = vmax.f32 %v408, 1e-24
  %v434 = vmax.f32 %v410, 1e-24
  %v435 = vmax.f32 %v412, 1e-24
  %v436 = vmax.f32 %v414, 1e-24
  %v437 = vmax.f32 %v416, 1e-24
  %v438 = vmax.f32 %v418, 1e-24
  %v439 = vmax.f32 %v420, 1e-24
  %v440 = vmax.f32 %v422, 1e-24
  %v441 = vmax.f32 %v424, 1e-24
  %v442 = vmax.f32 %v426, 1e-24
  %v443 = vrsqrt.pop %v427
  %v444 = vrsqrt.pop %v428
  %v445 = vrsqrt.pop %v429
  %v446 = vrsqrt.pop %v430
  %v447 = vrsqrt.pop %v431
  %v448 = vrsqrt.pop %v432
  %v449 = vrsqrt.pop %v433
  %v450 = vrsqrt.pop %v434
  %v451 = vrsqrt.pop %v435
  %v452 = vrsqrt.pop %v436
  %v453 = vrsqrt.pop %v437
  %v454 = vrsqrt.pop %v438
  %v455 = vrsqrt.pop %v439
  %v456 = vrsqrt.pop %v440
  %v457 = vrsqrt.pop %v441
  %v458 = vrsqrt.pop %v442
  %v459 = vmul.f32 %v301, %v301
  %v460 = vmul.f32 %v306, %v306
  %v461 = vmul.f32 %v311, %v311
  %v462 = vmul.f32 %v316, %v316
  %v463 = vmul.f32 %v321, %v321
  %v464 = vmul.f32 %v326, %v326
  %v465 = vmul.f32 %v331, %v331
  %v466 = vmul.f32 %v336, %v336
  %v467 = vmul.f32 %v341, %v341
  %v468 = vmul.f32 %v346, %v346
  %v469 = vmul.f32 %v351, %v351
  %v470 = vmul.f32 %v356, %v356
  %v471 = vmul.f32 %v361, %v361
  %v472 = vmul.f32 %v366, %v366
  %v473 = vmul.f32 %v371, %v371
  %v474 = vmul.f32 %v376, %v376
  %475 = vadd.xlane.f32.xlu0 %v459
  %v476 = vpop.xlane.xlu0 %475
  %477 = vadd.xlane.f32.xlu0 %v460
  %v478 = vpop.xlane.xlu0 %477
  %479 = vadd.xlane.f32.xlu0 %v461
  %v480 = vpop.xlane.xlu0 %479
  %481 = vadd.xlane.f32.xlu0 %v462
  %v482 = vpop.xlane.xlu0 %481
  %483 = vadd.xlane.f32.xlu0 %v463
  %v484 = vpop.xlane.xlu0 %483
  %485 = vadd.xlane.f32.xlu0 %v464
  %v486 = vpop.xlane.xlu0 %485
  %487 = vadd.xlane.f32.xlu0 %v465
  %v488 = vpop.xlane.xlu0 %487
  %489 = vadd.xlane.f32.xlu0 %v466
  %v490 = vpop.xlane.xlu0 %489
  %491 = vadd.xlane.f32.xlu0 %v467
  %v492 = vpop.xlane.xlu0 %491
  %493 = vadd.xlane.f32.xlu0 %v468
  %v494 = vpop.xlane.xlu0 %493
  %495 = vadd.xlane.f32.xlu0 %v469
  %v496 = vpop.xlane.xlu0 %495
  %497 = vadd.xlane.f32.xlu0 %v470
  %v498 = vpop.xlane.xlu0 %497
  %499 = vadd.xlane.f32.xlu0 %v471
  %v500 = vpop.xlane.xlu0 %499
  %501 = vadd.xlane.f32.xlu0 %v472
  %v502 = vpop.xlane.xlu0 %501
  %503 = vadd.xlane.f32.xlu0 %v473
  %v504 = vpop.xlane.xlu0 %503
  %505 = vadd.xlane.f32.xlu0 %v474
  %v506 = vpop.xlane.xlu0 %505
  %v507 = vmax.f32 %v476, 1e-24
  %v508 = vmax.f32 %v478, 1e-24
  %v509 = vmax.f32 %v480, 1e-24
  %v510 = vmax.f32 %v482, 1e-24
  %v511 = vmax.f32 %v484, 1e-24
  %v512 = vmax.f32 %v486, 1e-24
  %v513 = vmax.f32 %v488, 1e-24
  %v514 = vmax.f32 %v490, 1e-24
  %v515 = vmax.f32 %v492, 1e-24
  %v516 = vmax.f32 %v494, 1e-24
  %v517 = vmax.f32 %v496, 1e-24
  %v518 = vmax.f32 %v498, 1e-24
  %v519 = vmax.f32 %v500, 1e-24
  %v520 = vmax.f32 %v502, 1e-24
  %v521 = vmax.f32 %v504, 1e-24
  %v522 = vmax.f32 %v506, 1e-24
  %v523 = vrsqrt.pop %v507
  %v524 = vrsqrt.pop %v508
  %v525 = vrsqrt.pop %v509
  %v526 = vrsqrt.pop %v510
  %v527 = vrsqrt.pop %v511
  %v528 = vrsqrt.pop %v512
  %v529 = vrsqrt.pop %v513
  %v530 = vrsqrt.pop %v514
  %v531 = vrsqrt.pop %v515
  %v532 = vrsqrt.pop %v516
  %v533 = vrsqrt.pop %v517
  %v534 = vrsqrt.pop %v518
  %v535 = vrsqrt.pop %v519
  %v536 = vrsqrt.pop %v520
  %v537 = vrsqrt.pop %v521
  %v538 = vrsqrt.pop %v522
  %539 = vmatprep.subr.mxu0 0.0
  %540 = vmatpush1.msra.mxu0 %v37
  %541 = vmatprep.subr.mxu0 0.0
  %542 = vmatpush1.msra.mxu0 %v38
  %543 = vmatprep.subr.mxu0 0.0
  %544 = vmatpush1.msra.mxu0 %v39
  %545 = vmatprep.subr.mxu0 0.0
  %546 = vmatpush1.msra.mxu0 %v40
  %547 = vmatprep.subr.mxu0 0.0
  %548 = vmatpush1.msra.mxu0 %v41
  %549 = vmatprep.subr.mxu0 0.0
  %550 = vmatpush1.msra.mxu0 %v42
  %551 = vmatprep.subr.mxu0 0.0
  %552 = vmatpush1.msra.mxu0 %v43
  %553 = vmatprep.subr.mxu0 0.0
  %554 = vmatpush1.msra.mxu0 %v44
  %555 = vmatprep.subr.mxu0 0.0
  %556 = vmatpush1.msra.mxu0 %v45
  %557 = vmatprep.subr.mxu0 0.0
  %558 = vmatpush1.msra.mxu0 %v46
  %559 = vmatprep.subr.mxu0 0.0
  %560 = vmatpush1.msra.mxu0 %v47
  %561 = vmatprep.subr.mxu0 0.0
  %562 = vmatpush1.msra.mxu0 %v48
  %563 = vmatprep.subr.mxu0 0.0
  %564 = vmatpush1.msra.mxu0 %v49
  %565 = vmatprep.subr.mxu0 0.0
  %566 = vmatpush1.msra.mxu0 %v50
  %567 = vmatprep.subr.mxu0 0.0
  %568 = vmatpush1.msra.mxu0 %v51
  %569 = vmatprep.subr.mxu0 0.0
  %570 = vmatpush1.msra.mxu0 %v52
  %571 = vmatprep.subr.mxu0 0.0
  %572 = vmatpush1.msra.mxu0 0.0
  %573 = vmatprep.subr.mxu0 0.0
  %574 = vmatpush1.msra.mxu0 0.0
  %575 = vmatprep.subr.mxu0 0.0
  %576 = vmatpush1.msra.mxu0 0.0
  %577 = vmatprep.subr.mxu0 0.0
  %578 = vmatpush1.msra.mxu0 0.0
  %579 = vmatprep.subr.mxu0 0.0
  %580 = vmatpush1.msra.mxu0 0.0
  %581 = vmatprep.subr.mxu0 0.0
  %582 = vmatpush1.msra.mxu0 0.0
  %583 = vmatprep.subr.mxu0 0.0
  %584 = vmatpush1.msra.mxu0 0.0
  %585 = vmatprep.subr.mxu0 0.0
  %586 = vmatpush1.msra.mxu0 0.0
  %587 = vmatprep.subr.mxu0 0.0
  %588 = vmatpush1.msra.mxu0 0.0
  %589 = vmatprep.subr.mxu0 0.0
  %590 = vmatpush1.msra.mxu0 0.0
  %591 = vmatprep.subr.mxu0 0.0
  %592 = vmatpush1.msra.mxu0 0.0
  %593 = vmatprep.subr.mxu0 0.0
  %594 = vmatpush1.msra.mxu0 0.0
  %595 = vmatprep.subr.mxu0 0.0
  %596 = vmatpush1.msra.mxu0 0.0
  %597 = vmatprep.subr.mxu0 0.0
  %598 = vmatpush1.msra.mxu0 0.0
  %599 = vmatprep.subr.mxu0 0.0
  %600 = vmatpush1.msra.mxu0 0.0
  %601 = vmatprep.subr.mxu0 0.0
  %602 = vmatpush1.msra.mxu0 0.0
  %603 = vmatprep.mubr.f32.mxu0 0.0
  %604 = vmatmul.mubr.f32.gmra.mrb[0].mxu0 %v140
  %v605 = vpop.f32.mrb[0].mxu0
  %v606 = vadd.f32 0.0, %v605
  %v607 = vpop.f32.mrb[0].mxu0
  %608 = vmatprep.mubr.f32.mxu0 0.0
  %609 = vmatmul.mubr.f32.gmra.mrb[0].mxu0 %v145
  %v610 = vpop.f32.mrb[0].mxu0
  %v611 = vadd.f32 0.0, %v610
  %v612 = vpop.f32.mrb[0].mxu0
  %613 = vmatprep.mubr.f32.mxu0 0.0
  %614 = vmatmul.mubr.f32.gmra.mrb[0].mxu0 %v150
  %v615 = vpop.f32.mrb[0].mxu0
  %v616 = vadd.f32 0.0, %v615
  %v617 = vpop.f32.mrb[0].mxu0
  %618 = vmatprep.mubr.f32.mxu0 0.0
  %619 = vmatmul.mubr.f32.gmra.mrb[0].mxu0 %v155
  %v620 = vpop.f32.mrb[0].mxu0
  %v621 = vadd.f32 0.0, %v620
  %v622 = vpop.f32.mrb[0].mxu0
  %623 = vmatprep.mubr.f32.mxu0 0.0
  %624 = vmatmul.mubr.f32.gmra.mrb[0].mxu0 %v160
  %v625 = vpop.f32.mrb[0].mxu0
  %v626 = vadd.f32 0.0, %v625
  %v627 = vpop.f32.mrb[0].mxu0
  %628 = vmatprep.mubr.f32.mxu0 0.0
  %629 = vmatmul.mubr.f32.gmra.mrb[0].mxu0 %v165
  %v630 = vpop.f32.mrb[0].mxu0
  %v631 = vadd.f32 0.0, %v630
  %v632 = vpop.f32.mrb[0].mxu0
  %633 = vmatprep.mubr.f32.mxu0 0.0
  %634 = vmatmul.mubr.f32.gmra.mrb[0].mxu0 %v170
  %v635 = vpop.f32.mrb[0].mxu0
  %v636 = vadd.f32 0.0, %v635
  %v637 = vpop.f32.mrb[0].mxu0
  %638 = vmatprep.mubr.f32.mxu0 0.0
  %639 = vmatmul.mubr.f32.gmra.mrb[0].mxu0 %v175
  %v640 = vpop.f32.mrb[0].mxu0
  %v641 = vadd.f32 0.0, %v640
  %v642 = vpop.f32.mrb[0].mxu0
  %643 = vmatprep.mubr.f32.mxu0 0.0
  %644 = vmatmul.mubr.f32.gmra.mrb[0].mxu0 %v180
  %v645 = vpop.f32.mrb[0].mxu0
  %v646 = vadd.f32 0.0, %v645
  %v647 = vpop.f32.mrb[0].mxu0
  %648 = vmatprep.mubr.f32.mxu0 0.0
  %649 = vmatmul.mubr.f32.gmra.mrb[0].mxu0 %v185
  %v650 = vpop.f32.mrb[0].mxu0
  %v651 = vadd.f32 0.0, %v650
  %v652 = vpop.f32.mrb[0].mxu0
  %653 = vmatprep.mubr.f32.mxu0 0.0
  %654 = vmatmul.mubr.f32.gmra.mrb[0].mxu0 %v190
  %v655 = vpop.f32.mrb[0].mxu0
  %v656 = vadd.f32 0.0, %v655
  %v657 = vpop.f32.mrb[0].mxu0
  %658 = vmatprep.mubr.f32.mxu0 0.0
  %659 = vmatmul.mubr.f32.gmra.mrb[0].mxu0 %v195
  %v660 = vpop.f32.mrb[0].mxu0
  %v661 = vadd.f32 0.0, %v660
  %v662 = vpop.f32.mrb[0].mxu0
  %663 = vmatprep.mubr.f32.mxu0 0.0
  %664 = vmatmul.mubr.f32.gmra.mrb[0].mxu0 %v200
  %v665 = vpop.f32.mrb[0].mxu0
  %v666 = vadd.f32 0.0, %v665
  %v667 = vpop.f32.mrb[0].mxu0
  %668 = vmatprep.mubr.f32.mxu0 0.0
  %669 = vmatmul.mubr.f32.gmra.mrb[0].mxu0 %v205
  %v670 = vpop.f32.mrb[0].mxu0
  %v671 = vadd.f32 0.0, %v670
  %v672 = vpop.f32.mrb[0].mxu0
  %673 = vmatprep.mubr.f32.mxu0 0.0
  %674 = vmatmul.mubr.f32.gmra.mrb[0].mxu0 %v210
  %v675 = vpop.f32.mrb[0].mxu0
  %v676 = vadd.f32 0.0, %v675
  %v677 = vpop.f32.mrb[0].mxu0
  %678 = vmatprep.mubr.f32.mxu0 0.0
  %679 = vmatmul.mubr.f32.gmra.mrb[0].mxu0 %v215
  %v680 = vpop.f32.mrb[0].mxu0
  %v681 = vadd.f32 0.0, %v680
  %v682 = vpop.f32.mrb[0].mxu0
  %683 = vdwg.mxu0
  %v684 = vmul.f32 %v606, %v443
  %v685 = vmul.f32 %v611, %v444
  %v686 = vmul.f32 %v616, %v445
  %v687 = vmul.f32 %v621, %v446
  %v688 = vmul.f32 %v626, %v447
  %v689 = vmul.f32 %v631, %v448
  %v690 = vmul.f32 %v636, %v449
  %v691 = vmul.f32 %v641, %v450
  %v692 = vmul.f32 %v646, %v451
  %v693 = vmul.f32 %v651, %v452
  %v694 = vmul.f32 %v656, %v453
  %v695 = vmul.f32 %v661, %v454
  %v696 = vmul.f32 %v666, %v455
  %v697 = vmul.f32 %v671, %v456
  %v698 = vmul.f32 %v676, %v457
  %v699 = vmul.f32 %v681, %v458
  %v700 = vlaneseq
  %v701 = vshrl.u32 %v700, 7
  %v702 = vsub.s32 1, %v701
  %v703 = vrot.slane %v20, %v702
  %v704 = vadd.f32 %v684, %v703
  %v705 = vadd.f32 %v685, %v703
  %v706 = vadd.f32 %v686, %v703
  %v707 = vadd.f32 %v687, %v703
  %v708 = vadd.f32 %v688, %v703
  %v709 = vadd.f32 %v689, %v703
  %v710 = vadd.f32 %v690, %v703
  %v711 = vadd.f32 %v691, %v703
  %v712 = vadd.f32 %v692, %v703
  %v713 = vadd.f32 %v693, %v703
  %v714 = vadd.f32 %v694, %v703
  %v715 = vadd.f32 %v695, %v703
  %v716 = vadd.f32 %v696, %v703
  %v717 = vadd.f32 %v697, %v703
  %v718 = vadd.f32 %v698, %v703
  %v719 = vadd.f32 %v699, %v703
  %720 = vmatprep.subr.mxu0 0.0
  %721 = vmatpush1.msra.mxu0 %v37
  %722 = vmatprep.subr.mxu0 0.0
  %723 = vmatpush1.msra.mxu0 %v38
  %724 = vmatprep.subr.mxu0 0.0
  %725 = vmatpush1.msra.mxu0 %v39
  %726 = vmatprep.subr.mxu0 0.0
  %727 = vmatpush1.msra.mxu0 %v40
  %728 = vmatprep.subr.mxu0 0.0
  %729 = vmatpush1.msra.mxu0 %v41
  %730 = vmatprep.subr.mxu0 0.0
  %731 = vmatpush1.msra.mxu0 %v42
  %732 = vmatprep.subr.mxu0 0.0
  %733 = vmatpush1.msra.mxu0 %v43
  %734 = vmatprep.subr.mxu0 0.0
  %735 = vmatpush1.msra.mxu0 %v44
  %736 = vmatprep.subr.mxu0 0.0
  %737 = vmatpush1.msra.mxu0 %v45
  %738 = vmatprep.subr.mxu0 0.0
  %739 = vmatpush1.msra.mxu0 %v46
  %740 = vmatprep.subr.mxu0 0.0
  %741 = vmatpush1.msra.mxu0 %v47
  %742 = vmatprep.subr.mxu0 0.0
  %743 = vmatpush1.msra.mxu0 %v48
  %744 = vmatprep.subr.mxu0 0.0
  %745 = vmatpush1.msra.mxu0 %v49
  %746 = vmatprep.subr.mxu0 0.0
  %747 = vmatpush1.msra.mxu0 %v50
  %748 = vmatprep.subr.mxu0 0.0
  %749 = vmatpush1.msra.mxu0 %v51
  %750 = vmatprep.subr.mxu0 0.0
  %751 = vmatpush1.msra.mxu0 %v52
  %752 = vmatprep.subr.mxu0 0.0
  %753 = vmatpush1.msra.mxu0 0.0
  %754 = vmatprep.subr.mxu0 0.0
  %755 = vmatpush1.msra.mxu0 0.0
  %756 = vmatprep.subr.mxu0 0.0
  %757 = vmatpush1.msra.mxu0 0.0
  %758 = vmatprep.subr.mxu0 0.0
  %759 = vmatpush1.msra.mxu0 0.0
  %760 = vmatprep.subr.mxu0 0.0
  %761 = vmatpush1.msra.mxu0 0.0
  %762 = vmatprep.subr.mxu0 0.0
  %763 = vmatpush1.msra.mxu0 0.0
  %764 = vmatprep.subr.mxu0 0.0
  %765 = vmatpush1.msra.mxu0 0.0
  %766 = vmatprep.subr.mxu0 0.0
  %767 = vmatpush1.msra.mxu0 0.0
  %768 = vmatprep.subr.mxu0 0.0
  %769 = vmatpush1.msra.mxu0 0.0
  %770 = vmatprep.subr.mxu0 0.0
  %771 = vmatpush1.msra.mxu0 0.0
  %772 = vmatprep.subr.mxu0 0.0
  %773 = vmatpush1.msra.mxu0 0.0
  %774 = vmatprep.subr.mxu0 0.0
  %775 = vmatpush1.msra.mxu0 0.0
  %776 = vmatprep.subr.mxu0 0.0
  %777 = vmatpush1.msra.mxu0 0.0
  %778 = vmatprep.subr.mxu0 0.0
  %779 = vmatpush1.msra.mxu0 0.0
  %780 = vmatprep.subr.mxu0 0.0
  %781 = vmatpush1.msra.mxu0 0.0
  %782 = vmatprep.subr.mxu0 0.0
  %783 = vmatpush1.msra.mxu0 0.0
  %784 = vmatprep.mubr.f32.mxu0 0.0
  %785 = vmatmul.mubr.f32.gmra.mrb[0].mxu0 %v301
  %v786 = vpop.f32.mrb[0].mxu0
  %v787 = vadd.f32 0.0, %v786
  %v788 = vpop.f32.mrb[0].mxu0
  %789 = vmatprep.mubr.f32.mxu0 0.0
  %790 = vmatmul.mubr.f32.gmra.mrb[0].mxu0 %v306
  %v791 = vpop.f32.mrb[0].mxu0
  %v792 = vadd.f32 0.0, %v791
  %v793 = vpop.f32.mrb[0].mxu0
  %794 = vmatprep.mubr.f32.mxu0 0.0
  %795 = vmatmul.mubr.f32.gmra.mrb[0].mxu0 %v311
  %v796 = vpop.f32.mrb[0].mxu0
  %v797 = vadd.f32 0.0, %v796
  %v798 = vpop.f32.mrb[0].mxu0
  %799 = vmatprep.mubr.f32.mxu0 0.0
  %800 = vmatmul.mubr.f32.gmra.mrb[0].mxu0 %v316
  %v801 = vpop.f32.mrb[0].mxu0
  %v802 = vadd.f32 0.0, %v801
  %v803 = vpop.f32.mrb[0].mxu0
  %804 = vmatprep.mubr.f32.mxu0 0.0
  %805 = vmatmul.mubr.f32.gmra.mrb[0].mxu0 %v321
  %v806 = vpop.f32.mrb[0].mxu0
  %v807 = vadd.f32 0.0, %v806
  %v808 = vpop.f32.mrb[0].mxu0
  %809 = vmatprep.mubr.f32.mxu0 0.0
  %810 = vmatmul.mubr.f32.gmra.mrb[0].mxu0 %v326
  %v811 = vpop.f32.mrb[0].mxu0
  %v812 = vadd.f32 0.0, %v811
  %v813 = vpop.f32.mrb[0].mxu0
  %814 = vmatprep.mubr.f32.mxu0 0.0
  %815 = vmatmul.mubr.f32.gmra.mrb[0].mxu0 %v331
  %v816 = vpop.f32.mrb[0].mxu0
  %v817 = vadd.f32 0.0, %v816
  %v818 = vpop.f32.mrb[0].mxu0
  %819 = vmatprep.mubr.f32.mxu0 0.0
  %820 = vmatmul.mubr.f32.gmra.mrb[0].mxu0 %v336
  %v821 = vpop.f32.mrb[0].mxu0
  %v822 = vadd.f32 0.0, %v821
  %v823 = vpop.f32.mrb[0].mxu0
  %824 = vmatprep.mubr.f32.mxu0 0.0
  %825 = vmatmul.mubr.f32.gmra.mrb[0].mxu0 %v341
  %v826 = vpop.f32.mrb[0].mxu0
  %v827 = vadd.f32 0.0, %v826
  %v828 = vpop.f32.mrb[0].mxu0
  %829 = vmatprep.mubr.f32.mxu0 0.0
  %830 = vmatmul.mubr.f32.gmra.mrb[0].mxu0 %v346
  %v831 = vpop.f32.mrb[0].mxu0
  %v832 = vadd.f32 0.0, %v831
  %v833 = vpop.f32.mrb[0].mxu0
  %834 = vmatprep.mubr.f32.mxu0 0.0
  %835 = vmatmul.mubr.f32.gmra.mrb[0].mxu0 %v351
  %v836 = vpop.f32.mrb[0].mxu0
  %v837 = vadd.f32 0.0, %v836
  %v838 = vpop.f32.mrb[0].mxu0
  %839 = vmatprep.mubr.f32.mxu0 0.0
  %840 = vmatmul.mubr.f32.gmra.mrb[0].mxu0 %v356
  %v841 = vpop.f32.mrb[0].mxu0
  %v842 = vadd.f32 0.0, %v841
  %v843 = vpop.f32.mrb[0].mxu0
  %844 = vmatprep.mubr.f32.mxu0 0.0
  %845 = vmatmul.mubr.f32.gmra.mrb[0].mxu0 %v361
  %v846 = vpop.f32.mrb[0].mxu0
  %v847 = vadd.f32 0.0, %v846
  %v848 = vpop.f32.mrb[0].mxu0
  %849 = vmatprep.mubr.f32.mxu0 0.0
  %850 = vmatmul.mubr.f32.gmra.mrb[0].mxu0 %v366
  %v851 = vpop.f32.mrb[0].mxu0
  %v852 = vadd.f32 0.0, %v851
  %v853 = vpop.f32.mrb[0].mxu0
  %854 = vmatprep.mubr.f32.mxu0 0.0
  %855 = vmatmul.mubr.f32.gmra.mrb[0].mxu0 %v371
  %v856 = vpop.f32.mrb[0].mxu0
  %v857 = vadd.f32 0.0, %v856
  %v858 = vpop.f32.mrb[0].mxu0
  %859 = vmatprep.mubr.f32.mxu0 0.0
  %860 = vmatmul.mubr.f32.gmra.mrb[0].mxu0 %v376
  %v861 = vpop.f32.mrb[0].mxu0
  %v862 = vadd.f32 0.0, %v861
  %v863 = vpop.f32.mrb[0].mxu0
  %864 = vdwg.mxu0
  %v865 = vmul.f32 %v787, %v523
  %v866 = vmul.f32 %v792, %v524
  %v867 = vmul.f32 %v797, %v525
  %v868 = vmul.f32 %v802, %v526
  %v869 = vmul.f32 %v807, %v527
  %v870 = vmul.f32 %v812, %v528
  %v871 = vmul.f32 %v817, %v529
  %v872 = vmul.f32 %v822, %v530
  %v873 = vmul.f32 %v827, %v531
  %v874 = vmul.f32 %v832, %v532
  %v875 = vmul.f32 %v837, %v533
  %v876 = vmul.f32 %v842, %v534
  %v877 = vmul.f32 %v847, %v535
  %v878 = vmul.f32 %v852, %v536
  %v879 = vmul.f32 %v857, %v537
  %v880 = vmul.f32 %v862, %v538
  %v881 = vadd.f32 %v865, %v703
  %v882 = vadd.f32 %v866, %v703
  %v883 = vadd.f32 %v867, %v703
  %v884 = vadd.f32 %v868, %v703
  %v885 = vadd.f32 %v869, %v703
  %v886 = vadd.f32 %v870, %v703
  %v887 = vadd.f32 %v871, %v703
  %v888 = vadd.f32 %v872, %v703
  %v889 = vadd.f32 %v873, %v703
  %v890 = vadd.f32 %v874, %v703
  %v891 = vadd.f32 %v875, %v703
  %v892 = vadd.f32 %v876, %v703
  %v893 = vadd.f32 %v877, %v703
  %v894 = vadd.f32 %v878, %v703
  %v895 = vadd.f32 %v879, %v703
  %v896 = vadd.f32 %v880, %v703
  %v897 = vmul.f32 %v704, %v704
  %v898 = vmul.f32 %v705, %v705
  %v899 = vmul.f32 %v706, %v706
  %v900 = vmul.f32 %v707, %v707
  %v901 = vmul.f32 %v708, %v708
  %v902 = vmul.f32 %v709, %v709
  %v903 = vmul.f32 %v710, %v710
  %v904 = vmul.f32 %v711, %v711
  %v905 = vmul.f32 %v712, %v712
  %v906 = vmul.f32 %v713, %v713
  %v907 = vmul.f32 %v714, %v714
  %v908 = vmul.f32 %v715, %v715
  %v909 = vmul.f32 %v716, %v716
  %v910 = vmul.f32 %v717, %v717
  %v911 = vmul.f32 %v718, %v718
  %v912 = vmul.f32 %v719, %v719
  %v913 = vmul.f32 %v881, %v881
  %v914 = vmul.f32 %v882, %v882
  %v915 = vmul.f32 %v883, %v883
  %v916 = vmul.f32 %v884, %v884
  %v917 = vmul.f32 %v885, %v885
  %v918 = vmul.f32 %v886, %v886
  %v919 = vmul.f32 %v887, %v887
  %v920 = vmul.f32 %v888, %v888
  %v921 = vmul.f32 %v889, %v889
  %v922 = vmul.f32 %v890, %v890
  %v923 = vmul.f32 %v891, %v891
  %v924 = vmul.f32 %v892, %v892
  %v925 = vmul.f32 %v893, %v893
  %v926 = vmul.f32 %v894, %v894
  %v927 = vmul.f32 %v895, %v895
  %v928 = vmul.f32 %v896, %v896
  %v929 = vadd.f32 %v897, %v913
  %v930 = vadd.f32 %v898, %v914
  %v931 = vadd.f32 %v899, %v915
  %v932 = vadd.f32 %v900, %v916
  %v933 = vadd.f32 %v901, %v917
  %v934 = vadd.f32 %v902, %v918
  %v935 = vadd.f32 %v903, %v919
  %v936 = vadd.f32 %v904, %v920
  %v937 = vadd.f32 %v905, %v921
  %v938 = vadd.f32 %v906, %v922
  %v939 = vadd.f32 %v907, %v923
  %v940 = vadd.f32 %v908, %v924
  %v941 = vadd.f32 %v909, %v925
  %v942 = vadd.f32 %v910, %v926
  %v943 = vadd.f32 %v911, %v927
  %v944 = vadd.f32 %v912, %v928
  %v945 = vlaneseq
  %v946 = vshrl.u32 %v945, 7
  %v947 = vsub.s32 3, %v946
  %v948 = vrot.slane %v20, %v947
  %v949 = vmul.f32 %v948, %v929
  %v950 = vmul.f32 %v948, %v930
  %v951 = vmul.f32 %v948, %v931
  %v952 = vmul.f32 %v948, %v932
  %v953 = vmul.f32 %v948, %v933
  %v954 = vmul.f32 %v948, %v934
  %v955 = vmul.f32 %v948, %v935
  %v956 = vmul.f32 %v948, %v936
  %v957 = vmul.f32 %v948, %v937
  %v958 = vmul.f32 %v948, %v938
  %v959 = vmul.f32 %v948, %v939
  %v960 = vmul.f32 %v948, %v940
  %v961 = vmul.f32 %v948, %v941
  %v962 = vmul.f32 %v948, %v942
  %v963 = vmul.f32 %v948, %v943
  %v964 = vmul.f32 %v948, %v944
  %v965 = vmul.f32 %v704, %v881
  %v966 = vmul.f32 %v705, %v882
  %v967 = vmul.f32 %v706, %v883
  %v968 = vmul.f32 %v707, %v884
  %v969 = vmul.f32 %v708, %v885
  %v970 = vmul.f32 %v709, %v886
  %v971 = vmul.f32 %v710, %v887
  %v972 = vmul.f32 %v711, %v888
  %v973 = vmul.f32 %v712, %v889
  %v974 = vmul.f32 %v713, %v890
  %v975 = vmul.f32 %v714, %v891
  %v976 = vmul.f32 %v715, %v892
  %v977 = vmul.f32 %v716, %v893
  %v978 = vmul.f32 %v717, %v894
  %v979 = vmul.f32 %v718, %v895
  %v980 = vmul.f32 %v719, %v896
  %v981 = vlaneseq
  %v982 = vshrl.u32 %v981, 7
  %v983 = vsub.s32 2, %v982
  %v984 = vrot.slane %v20, %v983
  %v985 = vmul.f32 %v984, %v965
  %v986 = vmul.f32 %v984, %v966
  %v987 = vmul.f32 %v984, %v967
  %v988 = vmul.f32 %v984, %v968
  %v989 = vmul.f32 %v984, %v969
  %v990 = vmul.f32 %v984, %v970
  %v991 = vmul.f32 %v984, %v971
  %v992 = vmul.f32 %v984, %v972
  %v993 = vmul.f32 %v984, %v973
  %v994 = vmul.f32 %v984, %v974
  %v995 = vmul.f32 %v984, %v975
  %v996 = vmul.f32 %v984, %v976
  %v997 = vmul.f32 %v984, %v977
  %v998 = vmul.f32 %v984, %v978
  %v999 = vmul.f32 %v984, %v979
  %v1000 = vmul.f32 %v984, %v980
  %v1001 = vmul.f32 %v985, 2.0
  %v1002 = vmul.f32 %v986, 2.0
  %v1003 = vmul.f32 %v987, 2.0
  %v1004 = vmul.f32 %v988, 2.0
  %v1005 = vmul.f32 %v989, 2.0
  %v1006 = vmul.f32 %v990, 2.0
  %v1007 = vmul.f32 %v991, 2.0
  %v1008 = vmul.f32 %v992, 2.0
  %v1009 = vmul.f32 %v993, 2.0
  %v1010 = vmul.f32 %v994, 2.0
  %v1011 = vmul.f32 %v995, 2.0
  %v1012 = vmul.f32 %v996, 2.0
  %v1013 = vmul.f32 %v997, 2.0
  %v1014 = vmul.f32 %v998, 2.0
  %v1015 = vmul.f32 %v999, 2.0
  %v1016 = vmul.f32 %v1000, 2.0
  %v1017 = vadd.f32 %v949, %v1001
  %v1018 = vadd.f32 %v950, %v1002
  %v1019 = vadd.f32 %v951, %v1003
  %v1020 = vadd.f32 %v952, %v1004
  %v1021 = vadd.f32 %v953, %v1005
  %v1022 = vadd.f32 %v954, %v1006
  %v1023 = vadd.f32 %v955, %v1007
  %v1024 = vadd.f32 %v956, %v1008
  %v1025 = vadd.f32 %v957, %v1009
  %v1026 = vadd.f32 %v958, %v1010
  %v1027 = vadd.f32 %v959, %v1011
  %v1028 = vadd.f32 %v960, %v1012
  %v1029 = vadd.f32 %v961, %v1013
  %v1030 = vadd.f32 %v962, %v1014
  %v1031 = vadd.f32 %v963, %v1015
  %v1032 = vadd.f32 %v964, %v1016
  %1033 = vadd.xlane.f32.xlu0 %v1017
  %v1034 = vpop.xlane.xlu0 %1033
  %1035 = vadd.xlane.f32.xlu0 %v1018
  %v1036 = vpop.xlane.xlu0 %1035
  %1037 = vadd.xlane.f32.xlu0 %v1019
  %v1038 = vpop.xlane.xlu0 %1037
  %1039 = vadd.xlane.f32.xlu0 %v1020
  %v1040 = vpop.xlane.xlu0 %1039
  %1041 = vadd.xlane.f32.xlu0 %v1021
  %v1042 = vpop.xlane.xlu0 %1041
  %1043 = vadd.xlane.f32.xlu0 %v1022
  %v1044 = vpop.xlane.xlu0 %1043
  %1045 = vadd.xlane.f32.xlu0 %v1023
  %v1046 = vpop.xlane.xlu0 %1045
  %1047 = vadd.xlane.f32.xlu0 %v1024
  %v1048 = vpop.xlane.xlu0 %1047
  %1049 = vadd.xlane.f32.xlu0 %v1025
  %v1050 = vpop.xlane.xlu0 %1049
  %1051 = vadd.xlane.f32.xlu0 %v1026
  %v1052 = vpop.xlane.xlu0 %1051
  %1053 = vadd.xlane.f32.xlu0 %v1027
  %v1054 = vpop.xlane.xlu0 %1053
  %1055 = vadd.xlane.f32.xlu0 %v1028
  %v1056 = vpop.xlane.xlu0 %1055
  %1057 = vadd.xlane.f32.xlu0 %v1029
  %v1058 = vpop.xlane.xlu0 %1057
  %1059 = vadd.xlane.f32.xlu0 %v1030
  %v1060 = vpop.xlane.xlu0 %1059
  %1061 = vadd.xlane.f32.xlu0 %v1031
  %v1062 = vpop.xlane.xlu0 %1061
  %1063 = vadd.xlane.f32.xlu0 %v1032
  %v1064 = vpop.xlane.xlu0 %1063
  %vm1065 = vcmask 7168
  %1066 = vst.msk [vmem:[%s5] sm:$0xff] %vm1065, %v1034
  %1067 = vst.msk [vmem:[%s5 + $0x8] sm:$0xff] %vm1065, %v1036
  %1068 = vst.msk [vmem:[%s5 + $0x10] sm:$0xff] %vm1065, %v1038
  %1069 = vst.msk [vmem:[%s5 + $0x18] sm:$0xff] %vm1065, %v1040
  %1070 = vst.msk [vmem:[%s5 + $0x20] sm:$0xff] %vm1065, %v1042
  %1071 = vst.msk [vmem:[%s5 + $0x28] sm:$0xff] %vm1065, %v1044
  %1072 = vst.msk [vmem:[%s5 + $0x30] sm:$0xff] %vm1065, %v1046
  %1073 = vst.msk [vmem:[%s5 + $0x38] sm:$0xff] %vm1065, %v1048
  %1074 = vst.msk [vmem:[%s5 + $0x40] sm:$0xff] %vm1065, %v1050
  %1075 = vst.msk [vmem:[%s5 + $0x48] sm:$0xff] %vm1065, %v1052
  %1076 = vst.msk [vmem:[%s5 + $0x50] sm:$0xff] %vm1065, %v1054
  %1077 = vst.msk [vmem:[%s5 + $0x58] sm:$0xff] %vm1065, %v1056
  %1078 = vst.msk [vmem:[%s5 + $0x60] sm:$0xff] %vm1065, %v1058
  %1079 = vst.msk [vmem:[%s5 + $0x68] sm:$0xff] %vm1065, %v1060
  %1080 = vst.msk [vmem:[%s5 + $0x70] sm:$0xff] %vm1065, %v1062
  %1081 = vst.msk [vmem:[%s5 + $0x78] sm:$0xff] %vm1065, %v1064
  // Predicated region
  $region22: #{nplda_forward.1} parent=0 // pred_check
    _
  $region23: #{nplda_forward.1} parent=0 // pred_check_branch
    %1083 = sbr.rel (0) target = $region25
  $region24: #{nplda_forward.1} parent=0 // pred_region
    _
  $region25: #{nplda_forward.1} parent=0 // pred_fallthru
    _
  // Predicated region
  $region26: #{nplda_forward.1} parent=0 // pred_check
    _
  $region27: #{nplda_forward.1} parent=0 // pred_check_branch
    %1085 = sbr.rel (0) target = $region29
  $region28: #{nplda_forward.1} parent=0 // pred_region
    _
  $region29: #{nplda_forward.1} parent=0 // pred_fallthru
    _

</llo_original>
